<compile_context>
chip_gen: v6e
topology: v6e:2x2x1
jax: 0.10.0
libtpu: 0.0.40
codegen_flags: <defaults>
</compile_context>

<pallas_src>
import functools

import jax
import jax.numpy as jnp
import numpy as np
from jax.experimental import pallas as pl
from jax.experimental.pallas import tpu as pltpu


LANE = 128


def _round_up(x, m):
    return ((x + m - 1) // m) * m


def _pick_token_tile(n_tok, max_rows=512):
    """Largest 8-aligned divisor of n_tok not exceeding max_rows (or n_tok)."""
    if n_tok <= max_rows:
        return n_tok
    for t in range(max_rows, 7, -1):
        if n_tok % t == 0 and t % 8 == 0:
            return t
    return n_tok


# ----------------------------- fused kernel ---------------------------------
#
# Grid: (B, n_token_tiles); batch -> "parallel", token tiles -> "arbitrary".
# Per grid step:
#   emb  = tokens_tile(bf16) @ w_embed(bf16)     (MXU, f32 accumulation)
#   acc += sum(emb, axis=0)                       (pooled partial sum, VMEM f32)
# Last token tile of each batch element:
#   pooled = acc / Ntok + b_embed                 (mean(x@W + b) == mean(x@W)+b)
#   logits = pooled @ [w_main || w_src || 0] + [b_main || b_src || 0]

def fused_embed_pool_heads_kernel(
    tokens_ref,    # [t_tok, P]  bf16
    w_embed_ref,   # [P, Dp]     bf16
    b_embed_ref,   # [1, Dp]     f32
    w_heads_ref,   # [Dp, Hp]    f32  (main || src || zero-pad)
    b_heads_ref,   # [1, Hp]     f32
    logits_ref,    # [1, Hp]     f32  out
    pooled_ref,    # [1, Dp]     f32  out (features)
    acc_ref,       # [1, Dp]     f32  VMEM scratch (token-sum accumulator)
    *, inv_n_tok,
):
    t = pl.program_id(1)

    @pl.when(t == 0)
    def _():
        acc_ref[...] = jnp.zeros_like(acc_ref)

    emb = jnp.dot(tokens_ref[...], w_embed_ref[...],
                  preferred_element_type=jnp.float32)            # [t_tok, Dp]
    acc_ref[...] += jnp.sum(emb, axis=0, keepdims=True)           # [1, Dp]

    @pl.when(t == pl.num_programs(1) - 1)
    def _():
        pooled = acc_ref[...] * inv_n_tok + b_embed_ref[...]      # f32
        pooled_ref[...] = pooled
        logits_ref[...] = (
            jnp.dot(pooled, w_heads_ref[...],
                    preferred_element_type=jnp.float32)
            + b_heads_ref[...]
        )


# ------------------------------ model glue -----------------------------------

def patchify(x_nchw, ps):
    # [B, C, H, W] -> [B, N, C*ps*ps], C-major within each patch.
    B, C, H, W = x_nchw.shape
    gh, gw = H // ps, W // ps
    x = x_nchw.reshape(B, C, gh, ps, gw, ps)
    x = jnp.transpose(x, (0, 2, 4, 1, 3, 5))  # B, gh, gw, C, ps, ps
    return x.reshape(B, gh * gw, C * ps * ps)


def two_heads_forward(x_nchw, params, ps, *, t_tok=None):
    B, C, H, W = x_nchw.shape
    assert H % ps == 0 and W % ps == 0
    n_tok = (H // ps) * (W // ps)
    P = C * ps * ps
    D = params["w_embed"].shape[1]
    n_main = params["w_main"].shape[1]
    n_src = params["w_src"].shape[1]

    Dp = _round_up(D, LANE)                 # lane-dense embed dim
    Hp = _round_up(n_main + n_src, LANE)    # lane-dense fused head width

    if t_tok is None:
        t_tok = _pick_token_tile(n_tok)
    assert n_tok % t_tok == 0
    n_tiles = n_tok // t_tok

    # ---- glue: patchify + pad/fuse weights (cheap, plain JAX) ----
    tokens = patchify(x_nchw, ps).astype(jnp.bfloat16)            # [B, N, P]
    w_embed = jnp.zeros((P, Dp), jnp.bfloat16).at[:, :D].set(
        params["w_embed"].astype(jnp.bfloat16))
    b_embed = jnp.zeros((1, Dp), jnp.float32).at[:, :D].set(params["b_embed"])
    w_heads = jnp.zeros((Dp, Hp), jnp.float32)
    w_heads = w_heads.at[:D, :n_main].set(params["w_main"])
    w_heads = w_heads.at[:D, n_main:n_main + n_src].set(params["w_src"])
    b_heads = jnp.zeros((1, Hp), jnp.float32)
    b_heads = b_heads.at[:, :n_main].set(params["b_main"])
    b_heads = b_heads.at[:, n_main:n_main + n_src].set(params["b_src"])

    kernel = functools.partial(fused_embed_pool_heads_kernel,
                               inv_n_tok=1.0 / n_tok)

    logits, pooled = pl.pallas_call(
        kernel,
        out_shape=(
            jax.ShapeDtypeStruct((B, 1, Hp), jnp.float32),   # fused logits
            jax.ShapeDtypeStruct((B, 1, Dp), jnp.float32),   # pooled features
        ),
        grid_spec=pltpu.PrefetchScalarGridSpec(
            num_scalar_prefetch=0,
            grid=(B, n_tiles),
            in_specs=[
                pl.BlockSpec((None, t_tok, P), lambda b, t: (b, t, 0)),
                pl.BlockSpec((P, Dp), lambda b, t: (0, 0)),
                pl.BlockSpec((1, Dp), lambda b, t: (0, 0)),
                pl.BlockSpec((Dp, Hp), lambda b, t: (0, 0)),
                pl.BlockSpec((1, Hp), lambda b, t: (0, 0)),
            ],
            out_specs=(
                pl.BlockSpec((None, 1, Hp), lambda b, t: (b, 0, 0)),
                pl.BlockSpec((None, 1, Dp), lambda b, t: (b, 0, 0)),
            ),
            scratch_shapes=[pltpu.VMEM((1, Dp), jnp.float32)],
        ),
        compiler_params=pltpu.CompilerParams(
            dimension_semantics=("parallel", "arbitrary"),
            vmem_limit_bytes=48 * 1024 * 1024,   # fits v7x's 64 MiB with headroom
        ),
    )(tokens, w_embed, b_embed, w_heads, b_heads)

    logits = logits.reshape(B, Hp)
    output = logits[:, :n_main]                       # backbone main head
    source_output = logits[:, n_main:n_main + n_src]  # TwoHeadsModel.source_head
    features = pooled.reshape(B, Dp)[:, :D]           # pooled backbone features

    # TODO(synk): VOLO-specific branch (aux_head + `out + 0.5 * aux.max(1)[0]`)
    # is not modeled; only the generic avg-pool + source_head path.
    return output, source_output, features


# --------------------------------- main --------------------------------------

if __name__ == "__main__":
    B, C, H, W = 2, 4, 16, 16
    ps = 4
    P = C * ps * ps              # 64
    D = 32                       # embed dim
    N_MAIN = 10                  # backbone head classes
    N_SRC = 8                    # source_head classes

    key = jax.random.PRNGKey(0)
    k_x, k_we, k_be, k_wm, k_bm, k_ws, k_bs = jax.random.split(key, 7)

    x = jax.random.normal(k_x, (B, C, H, W), dtype=jnp.float32)
    params = {
        "w_embed": 0.05 * jax.random.normal(k_we, (P, D), dtype=jnp.float32),
        "b_embed": 0.01 * jax.random.normal(k_be, (1, D), dtype=jnp.float32),
        "w_main":  0.05 * jax.random.normal(k_wm, (D, N_MAIN), dtype=jnp.float32),
        "b_main":  0.01 * jax.random.normal(k_bm, (1, N_MAIN), dtype=jnp.float32),
        "w_src":   0.05 * jax.random.normal(k_ws, (D, N_SRC), dtype=jnp.float32),
        "b_src":   0.01 * jax.random.normal(k_bs, (1, N_SRC), dtype=jnp.float32),
    }

    # t_tok=8 -> 2 token tiles per batch element: exercises the accumulator path.
    output, source_output, features = two_heads_forward(x, params, ps, t_tok=8)
    jax.block_until_ready((output, source_output, features))

    # pure-JAX f32 reference check (kernel uses bf16 MXU inputs -> relaxed tol)
    tok_ref = patchify(x, ps).reshape(B * (H // ps) * (W // ps), P)
    llo_ref = (tok_ref @ params["w_embed"] + params["b_embed"]).reshape(B, -1, D)
    pooled_ref = llo_ref.mean(axis=1)
    out_ref = pooled_ref @ params["w_main"] + params["b_main"]
    src_ref = pooled_ref @ params["w_src"] + params["b_src"]

    np.testing.assert_allclose(np.asarray(output), np.asarray(out_ref),
                               rtol=5e-2, atol=5e-3)
    np.testing.assert_allclose(np.asarray(source_output), np.asarray(src_ref),
                               rtol=5e-2, atol=5e-3)
    np.testing.assert_allclose(np.asarray(features), np.asarray(pooled_ref),
                               rtol=5e-2, atol=5e-3)

    print("KERNEL_OK")
</pallas_src>

<mosaic_0001>
module attributes {stable_mosaic.version = 11 : i64} {
  func.func @fused_embed_pool_heads_kernel(%arg0: i32, %arg1: i32, %arg2: memref<1x8x64xbf16, #tpu.memory_space<vmem>>, %arg3: memref<64x128xbf16, #tpu.memory_space<vmem>>, %arg4: memref<1x128xf32, #tpu.memory_space<vmem>>, %arg5: memref<128x128xf32, #tpu.memory_space<vmem>>, %arg6: memref<1x128xf32, #tpu.memory_space<vmem>>, %arg7: memref<1x1x128xf32, #tpu.memory_space<vmem>>, %arg8: memref<1x1x128xf32, #tpu.memory_space<vmem>>, %arg9: memref<1x128xf32, #tpu.memory_space<vmem>>) attributes {dimension_semantics = [#tpu.dimension_semantics<parallel>, #tpu.dimension_semantics<arbitrary>], iteration_bounds = array<i64: 2, 2>, scalar_prefetch = 0 : i64, scratch_operands = 1 : i64, tpu.core_type = #tpu.core_type<tc>, window_params = [{transform_indices = @transform_0, window_bounds = array<i64: 1, 8, 64>}, {pipeline_mode = #tpu.pipeline_mode<synchronous>, transform_indices = @transform_1, window_bounds = array<i64: 64, 128>}, {pipeline_mode = #tpu.pipeline_mode<synchronous>, transform_indices = @transform_2, window_bounds = array<i64: 1, 128>}, {pipeline_mode = #tpu.pipeline_mode<synchronous>, transform_indices = @transform_3, window_bounds = array<i64: 128, 128>}, {pipeline_mode = #tpu.pipeline_mode<synchronous>, transform_indices = @transform_4, window_bounds = array<i64: 1, 128>}, {transform_indices = @transform_5, window_bounds = array<i64: 1, 1, 128>}, {transform_indices = @transform_6, window_bounds = array<i64: 1, 1, 128>}]} {
    %c0_i32 = arith.constant 0 : i32
    %0 = arith.cmpi eq, %arg1, %c0_i32 : i32
    %1 = arith.extui %0 : i1 to i32
    %c0_i32_0 = arith.constant 0 : i32
    %2 = arith.cmpi ne, %1, %c0_i32_0 : i32
    scf.if %2 {
      %cst_11 = arith.constant 0.000000e+00 : f32
      %15 = vector.broadcast %cst_11 : f32 to vector<1x128xf32>
      %c0_12 = arith.constant 0 : index
      %c0_13 = arith.constant 0 : index
      %16 = vector.load %arg9[%c0_12, %c0_13] : memref<1x128xf32, #tpu.memory_space<vmem>>, vector<1x128xf32>
      tpu.vector_store %arg9[%c0_12, %c0_13], %15 {strides = array<i32>} : memref<1x128xf32, #tpu.memory_space<vmem>>, vector<1x128xf32>,
    } else {
    }
    %c0 = arith.constant 0 : index
    %c0_1 = arith.constant 0 : index
    %c0_2 = arith.constant 0 : index
    %3 = vector.load %arg2[%c0, %c0_1, %c0_2] : memref<1x8x64xbf16, #tpu.memory_space<vmem>>, vector<1x8x64xbf16>
    %4 = vector.shape_cast %3 : vector<1x8x64xbf16> to vector<8x64xbf16>
    %c0_3 = arith.constant 0 : index
    %c0_4 = arith.constant 0 : index
    %5 = vector.load %arg3[%c0_3, %c0_4] : memref<64x128xbf16, #tpu.memory_space<vmem>>, vector<64x128xbf16>
    %cst = arith.constant dense<0.000000e+00> : vector<8x128xf32>
    %6 = tpu.matmul %4, %5, %cst {dimension_numbers = #tpu.dot_dimension_numbers<[1], [0], [0], [1], [0, 0, 1, 1], [], []>} : vector<8x64xbf16>, vector<64x128xbf16>, vector<8x128xf32> -> vector<8x128xf32>
    %c0_5 = arith.constant 0 : index
    %c0_6 = arith.constant 0 : index
    %7 = vector.load %arg9[%c0_5, %c0_6] : memref<1x128xf32, #tpu.memory_space<vmem>>, vector<1x128xf32>
    %cst_7 = arith.constant dense<0.000000e+00> : vector<128xf32>
    %8 = vector.multi_reduction <add>, %6, %cst_7 [0] : vector<8x128xf32> to vector<128xf32>
    %9 = vector.shape_cast %8 : vector<128xf32> to vector<1x128xf32>
    %10 = arith.addf %7, %9 : vector<1x128xf32>
    %c0_8 = arith.constant 0 : index
    %c0_9 = arith.constant 0 : index
    %11 = vector.load %arg9[%c0_8, %c0_9] : memref<1x128xf32, #tpu.memory_space<vmem>>, vector<1x128xf32>
    tpu.vector_store %arg9[%c0_8, %c0_9], %10 {strides = array<i32>} : memref<1x128xf32, #tpu.memory_space<vmem>>, vector<1x128xf32>,
    %c1_i32 = arith.constant 1 : i32
    %12 = arith.cmpi eq, %arg1, %c1_i32 : i32
    %13 = arith.extui %12 : i1 to i32
    %c0_i32_10 = arith.constant 0 : i32
    %14 = arith.cmpi ne, %13, %c0_i32_10 : i32
    scf.if %14 {
      %c0_11 = arith.constant 0 : index
      %c0_12 = arith.constant 0 : index
      %15 = vector.load %arg9[%c0_11, %c0_12] : memref<1x128xf32, #tpu.memory_space<vmem>>, vector<1x128xf32>
      %cst_13 = arith.constant 6.250000e-02 : f32
      %16 = vector.broadcast %cst_13 : f32 to vector<1x128xf32>
      %17 = arith.mulf %15, %16 : vector<1x128xf32>
      %c0_14 = arith.constant 0 : index
      %c0_15 = arith.constant 0 : index
      %18 = vector.load %arg4[%c0_14, %c0_15] : memref<1x128xf32, #tpu.memory_space<vmem>>, vector<1x128xf32>
      %19 = arith.addf %17, %18 : vector<1x128xf32>
      %c0_16 = arith.constant 0 : index
      %c0_17 = arith.constant 0 : index
      %c0_18 = arith.constant 0 : index
      %20 = vector.load %arg8[%c0_16, %c0_17, %c0_18] : memref<1x1x128xf32, #tpu.memory_space<vmem>>, vector<1x1x128xf32>
      %21 = vector.shape_cast %20 : vector<1x1x128xf32> to vector<1x128xf32>
      %22 = vector.shape_cast %19 : vector<1x128xf32> to vector<1x1x128xf32>
      tpu.vector_store %arg8[%c0_16, %c0_17, %c0_18], %22 {strides = array<i32>} : memref<1x1x128xf32, #tpu.memory_space<vmem>>, vector<1x1x128xf32>,
      %c0_19 = arith.constant 0 : index
      %c0_20 = arith.constant 0 : index
      %23 = vector.load %arg5[%c0_19, %c0_20] : memref<128x128xf32, #tpu.memory_space<vmem>>, vector<128x128xf32>
      %cst_21 = arith.constant dense<0.000000e+00> : vector<1x128xf32>
      %24 = tpu.matmul %19, %23, %cst_21 {dimension_numbers = #tpu.dot_dimension_numbers<[1], [0], [0], [1], [0, 0, 1, 1], [], []>} : vector<1x128xf32>, vector<128x128xf32>, vector<1x128xf32> -> vector<1x128xf32>
      %c0_22 = arith.constant 0 : index
      %c0_23 = arith.constant 0 : index
      %25 = vector.load %arg6[%c0_22, %c0_23] : memref<1x128xf32, #tpu.memory_space<vmem>>, vector<1x128xf32>
      %26 = arith.addf %24, %25 : vector<1x128xf32>
      %c0_24 = arith.constant 0 : index
      %c0_25 = arith.constant 0 : index
      %c0_26 = arith.constant 0 : index
      %27 = vector.load %arg7[%c0_24, %c0_25, %c0_26] : memref<1x1x128xf32, #tpu.memory_space<vmem>>, vector<1x1x128xf32>
      %28 = vector.shape_cast %27 : vector<1x1x128xf32> to vector<1x128xf32>
      %29 = vector.shape_cast %26 : vector<1x128xf32> to vector<1x1x128xf32>
      tpu.vector_store %arg7[%c0_24, %c0_25, %c0_26], %29 {strides = array<i32>} : memref<1x1x128xf32, #tpu.memory_space<vmem>>, vector<1x1x128xf32>,
    } else {
    }
    return
  }
  func.func @transform_0(%arg0: i32, %arg1: i32) -> (i32, i32, i32) {
    %c0_i32 = arith.constant 0 : i32
    %c0_i32_0 = arith.constant 0 : i32
    return %arg0, %arg1, %c0_i32 : i32, i32, i32
  }
  func.func @transform_1(%arg0: i32, %arg1: i32) -> (i32, i32) {
    %c0_i32 = arith.constant 0 : i32
    %c0_i32_0 = arith.constant 0 : i32
    %c0_i32_1 = arith.constant 0 : i32
    return %c0_i32, %c0_i32_0 : i32, i32
  }
  func.func @transform_2(%arg0: i32, %arg1: i32) -> (i32, i32) {
    %c0_i32 = arith.constant 0 : i32
    %c0_i32_0 = arith.constant 0 : i32
    %c0_i32_1 = arith.constant 0 : i32
    return %c0_i32, %c0_i32_0 : i32, i32
  }
  func.func @transform_3(%arg0: i32, %arg1: i32) -> (i32, i32) {
    %c0_i32 = arith.constant 0 : i32
    %c0_i32_0 = arith.constant 0 : i32
    %c0_i32_1 = arith.constant 0 : i32
    return %c0_i32, %c0_i32_0 : i32, i32
  }
  func.func @transform_4(%arg0: i32, %arg1: i32) -> (i32, i32) {
    %c0_i32 = arith.constant 0 : i32
    %c0_i32_0 = arith.constant 0 : i32
    %c0_i32_1 = arith.constant 0 : i32
    return %c0_i32, %c0_i32_0 : i32, i32
  }
  func.func @transform_5(%arg0: i32, %arg1: i32) -> (i32, i32, i32) {
    %c0_i32 = arith.constant 0 : i32
    %c0_i32_0 = arith.constant 0 : i32
    %c0_i32_1 = arith.constant 0 : i32
    return %arg0, %c0_i32, %c0_i32_0 : i32, i32, i32
  }
  func.func @transform_6(%arg0: i32, %arg1: i32) -> (i32, i32, i32) {
    %c0_i32 = arith.constant 0 : i32
    %c0_i32_0 = arith.constant 0 : i32
    %c0_i32_1 = arith.constant 0 : i32
    return %arg0, %c0_i32, %c0_i32_0 : i32, i32, i32
  }
}

</mosaic_0001>

<llo_original>
// kernel: tpu_custom_call.1
$region0: #{tpu_custom_call.1}
  #allocation0 [shape = 'u32[]', space=smem, size = 0x4, offset = 0x4, fixed_abs, tag = 'smem constant byte address 0x4 - core index']
  #allocation1 [shape = 'u32[144,128]{1,0:T(1,128)}', space=vmem, size = 0x12000, scoped, tag = 'internal scratch']
  #allocation2 [shape = 'f32[1,128]{1,0:T(1,128)}', space=vmem, size = 0x200, scoped, tag = 'scratch operand']
  %s0 = inlined_call_operand.hbm [shape: bf16[2,16,64], index: 0, kind: input, shape index: {}]
  %s1 = inlined_call_operand.hbm [shape: bf16[64,128], index: 1, kind: input, shape index: {}]
  %s2 = inlined_call_operand.vmem [shape: f32[1,128], index: 2, kind: input, shape index: {}]
  %s3 = inlined_call_operand.hbm [shape: f32[128,128], index: 3, kind: input, shape index: {}]
  %s4 = inlined_call_operand.vmem [shape: f32[1,128], index: 4, kind: input, shape index: {}]
  %s5 = inlined_call_operand.hbm [shape: f32[2,1,128], index: 5, kind: output, shape index: {0}]
  %s6 = inlined_call_operand.hbm [shape: f32[2,1,128], index: 6, kind: output, shape index: {1}]
  %7 = xla_tuple %s5, %s6
  %s8 = sld [smem:[#allocation0]]
  $region81: #{tpu_custom_call.1} parent=0
    _
  %s10 = ssub.s32 1, %s8
  %s11 = scalar_select 0, %s10, %s8
  $region1: #{tpu_custom_call.1} parent=0
    #allocation3 [shape = 'u8[4096]{0}', space=vmem, size = 0x1000, scoped, tag = 'input window, operand 0']
    #allocation4 [shape = 's32[2]{0}', space=sflag, size = 0x8, scoped, tag = 'scoped memory for tpu_custom_call.1']
    #allocation5 [shape = 's32[2]{0}', space=sflag, size = 0x8, scoped, tag = 'scoped memory for tpu_custom_call.1']
    #allocation6 [shape = 'u8[16384]{0}', space=vmem, size = 0x4000, scoped, tag = 'input window, operand 1, single buffered']
    #allocation7 [shape = 's32[1]{0}', space=sflag, size = 0x4, scoped, tag = 'scoped memory for tpu_custom_call.1']
    #allocation8 [shape = 'u8[65536]{0}', space=vmem, size = 0x10000, scoped, tag = 'input window, operand 3, single buffered']
    #allocation9 [shape = 'u8[1024]{0}', space=vmem, size = 0x400, scoped, tag = 'output window, operand 0']
    #allocation10 [shape = 'u8[1024]{0}', space=vmem, size = 0x400, scoped, tag = 'output window, operand 1']
    #allocation11 [shape = 's32[2]{0}', space=sflag, size = 0x8, scoped, tag = 'scoped memory for tpu_custom_call.1']
    %12 = vsyncpa [#allocation4], 0
    %s13 = scalar_lea.sflag [#allocation4], 1
    %14 = vsyncpa %s13, 0
    %15 = vsyncpa [#allocation7], 0
    %16 = vsyncpa [#allocation5], 0
    %s17 = scalar_lea.sflag [#allocation5], 1
    %18 = vsyncpa %s17, 0
    %19 = vsyncpa [#allocation11], 0
    %s20 = scalar_lea.sflag [#allocation11], 1
    %21 = vsyncpa %s20, 0
    loop: start=0, step=1, limit=6
    $region2: #{tpu_custom_call.1} parent=1 // loop_pre_header
      _
    $region3: #{tpu_custom_call.1} parent=1 // loop_header
      %s23 = sphi 0, %s27
      %p24 = scmp.ge.s32.totalorder %s23, 6
      %s30 = sphi 0, %s42
      %s31 = sphi 0, %s38
      %s32 = sphi 0, %s30
      %s33 = sphi 0, %s31
      %s34 = sphi 0, %s32
      %s35 = sphi 0, %s33
      %s47 = sphi 0, %s49
      %s50 = sphi 0, %s47
      %s51 = sphi 0, %s50
      %s67 = sphi 0, %s51
      %s71 = sphi 0, %s71
      %s73 = sphi 0, %s71
      %s74 = sphi 0, %s73
      %s88 = sphi 0, %s74
      %s92 = sphi 0, %s92
      %s94 = sphi 0, %s92
      %s95 = sphi 0, %s94
      %s109 = sphi 0, %s95
      %s113 = sphi 0, %s113
      %s115 = sphi 0, %s113
      %s116 = sphi 0, %s115
      %s130 = sphi 0, %s116
      %s134 = sphi 0, %s134
      %s136 = sphi 0, %s134
      %s137 = sphi 0, %s136
      %s151 = sphi 0, %s137
      %s157 = sphi 0, %s159
      %s160 = sphi 0, %s157
      %s161 = sphi 0, %s160
      %s177 = sphi 0, %s161
      %s183 = sphi 0, %s185
      %s186 = sphi 0, %s183
      %s187 = sphi 0, %s186
      %s203 = sphi 0, %s187
    $region4: #{tpu_custom_call.1} parent=1 // loop_header_branch
      %26 = sbr.rel (%p24) target = $region8
    $region5: #{tpu_custom_call.1} parent=1 // loop_body
      %s28 = ssub.s32 %s23, 1
      %s29 = ssub.s32 %s23, 2
      %s36 = sadd.s32 1, %s31
      %p37 = scmp.ge.s32.totalorder %s36, 2
      %s38 = scalar_select %p37, 0, %s36
      %s39 = sadd.s32 1, %s30
      %s40 = scalar_select %p37, %s39, %s30
      %p41 = scmp.ge.s32.totalorder %s40, 2
      %s42 = scalar_select %p41, 0, %s40
      %s43 = ssub.s32 %s30, %s42
      %s44 = ssub.s32 %s31, %s38
      %s45 = sor.u32 %s43, %s44
      %p46 = scmp.eq.s32.totalorder %s45, 0
      %s48 = sadd.s32 %s47, 1
      %s49 = scalar_select %p46, %s47, %s48
      %p52 = pneg %p46
      %p53 = scmp.eq.s32.totalorder %s23, 3
      %p54 = por %p52, %p53
      %p55 = scmp.ne.s32.totalorder %s47, %s50
      %p56 = scmp.eq.s32.totalorder %s23, 0
      %p57 = por %p55, %p56
      %p58 = scmp.ne.s32.totalorder %s47, %s50
      %p59 = scmp.eq.s32.totalorder %s28, 3
      %p60 = por %p58, %p59
      %p61 = scmp.ne.s32.totalorder %s50, %s51
      %p62 = scmp.eq.s32.totalorder %s28, 0
      %p63 = por %p61, %p62
      %p64 = scmp.ne.s32.totalorder %s50, %s51
      %p65 = scmp.eq.s32.totalorder %s29, 3
      %p66 = por %p64, %p65
      %p68 = scmp.ne.s32.totalorder %s51, %s67
      %p69 = scmp.eq.s32.totalorder %s29, 0
      %p70 = por %p68, %p69
      %s72 = sadd.s32 %s71, 1
      %p75 = scmp.eq.s32.totalorder %s23, 3
      %p76 = scmp.ne.s32.totalorder %s71, %s73
      %p77 = scmp.eq.s32.totalorder %s23, 0
      %p78 = por %p76, %p77
      %p79 = scmp.ne.s32.totalorder %s71, %s73
      %p80 = scmp.eq.s32.totalorder %s28, 3
      %p81 = por %p79, %p80
      %p82 = scmp.ne.s32.totalorder %s73, %s74
      %p83 = scmp.eq.s32.totalorder %s28, 0
      %p84 = por %p82, %p83
      %p85 = scmp.ne.s32.totalorder %s73, %s74
      %p86 = scmp.eq.s32.totalorder %s29, 3
      %p87 = por %p85, %p86
      %p89 = scmp.ne.s32.totalorder %s74, %s88
      %p90 = scmp.eq.s32.totalorder %s29, 0
      %p91 = por %p89, %p90
      %s93 = sadd.s32 %s92, 1
      %p96 = scmp.eq.s32.totalorder %s23, 3
      %p97 = scmp.ne.s32.totalorder %s92, %s94
      %p98 = scmp.eq.s32.totalorder %s23, 0
      %p99 = por %p97, %p98
      %p100 = scmp.ne.s32.totalorder %s92, %s94
      %p101 = scmp.eq.s32.totalorder %s28, 3
      %p102 = por %p100, %p101
      %p103 = scmp.ne.s32.totalorder %s94, %s95
      %p104 = scmp.eq.s32.totalorder %s28, 0
      %p105 = por %p103, %p104
      %p106 = scmp.ne.s32.totalorder %s94, %s95
      %p107 = scmp.eq.s32.totalorder %s29, 3
      %p108 = por %p106, %p107
      %p110 = scmp.ne.s32.totalorder %s95, %s109
      %p111 = scmp.eq.s32.totalorder %s29, 0
      %p112 = por %p110, %p111
      %s114 = sadd.s32 %s113, 1
      %p117 = scmp.eq.s32.totalorder %s23, 3
      %p118 = scmp.ne.s32.totalorder %s113, %s115
      %p119 = scmp.eq.s32.totalorder %s23, 0
      %p120 = por %p118, %p119
      %p121 = scmp.ne.s32.totalorder %s113, %s115
      %p122 = scmp.eq.s32.totalorder %s28, 3
      %p123 = por %p121, %p122
      %p124 = scmp.ne.s32.totalorder %s115, %s116
      %p125 = scmp.eq.s32.totalorder %s28, 0
      %p126 = por %p124, %p125
      %p127 = scmp.ne.s32.totalorder %s115, %s116
      %p128 = scmp.eq.s32.totalorder %s29, 3
      %p129 = por %p127, %p128
      %p131 = scmp.ne.s32.totalorder %s116, %s130
      %p132 = scmp.eq.s32.totalorder %s29, 0
      %p133 = por %p131, %p132
      %s135 = sadd.s32 %s134, 1
      %p138 = scmp.eq.s32.totalorder %s23, 3
      %p139 = scmp.ne.s32.totalorder %s134, %s136
      %p140 = scmp.eq.s32.totalorder %s23, 0
      %p141 = por %p139, %p140
      %p142 = scmp.ne.s32.totalorder %s134, %s136
      %p143 = scmp.eq.s32.totalorder %s28, 3
      %p144 = por %p142, %p143
      %p145 = scmp.ne.s32.totalorder %s136, %s137
      %p146 = scmp.eq.s32.totalorder %s28, 0
      %p147 = por %p145, %p146
      %p148 = scmp.ne.s32.totalorder %s136, %s137
      %p149 = scmp.eq.s32.totalorder %s29, 3
      %p150 = por %p148, %p149
      %p152 = scmp.ne.s32.totalorder %s137, %s151
      %p153 = scmp.eq.s32.totalorder %s29, 0
      %p154 = por %p152, %p153
      %s155 = ssub.s32 %s30, %s42
      %p156 = scmp.eq.s32.totalorder %s155, 0
      %s158 = sadd.s32 %s157, 1
      %s159 = scalar_select %p156, %s157, %s158
      %p162 = pneg %p156
      %p163 = scmp.eq.s32.totalorder %s23, 3
      %p164 = por %p162, %p163
      %p165 = scmp.ne.s32.totalorder %s157, %s160
      %p166 = scmp.eq.s32.totalorder %s23, 0
      %p167 = por %p165, %p166
      %p168 = scmp.ne.s32.totalorder %s157, %s160
      %p169 = scmp.eq.s32.totalorder %s28, 3
      %p170 = por %p168, %p169
      %p171 = scmp.ne.s32.totalorder %s160, %s161
      %p172 = scmp.eq.s32.totalorder %s28, 0
      %p173 = por %p171, %p172
      %p174 = scmp.ne.s32.totalorder %s160, %s161
      %p175 = scmp.eq.s32.totalorder %s29, 3
      %p176 = por %p174, %p175
      %p178 = scmp.ne.s32.totalorder %s161, %s177
      %p179 = scmp.eq.s32.totalorder %s29, 0
      %p180 = por %p178, %p179
      %s181 = ssub.s32 %s30, %s42
      %p182 = scmp.eq.s32.totalorder %s181, 0
      %s184 = sadd.s32 %s183, 1
      %s185 = scalar_select %p182, %s183, %s184
      %p188 = pneg %p182
      %p189 = scmp.eq.s32.totalorder %s23, 3
      %p190 = por %p188, %p189
      %p191 = scmp.ne.s32.totalorder %s183, %s186
      %p192 = scmp.eq.s32.totalorder %s23, 0
      %p193 = por %p191, %p192
      %p194 = scmp.ne.s32.totalorder %s183, %s186
      %p195 = scmp.eq.s32.totalorder %s28, 3
      %p196 = por %p194, %p195
      %p197 = scmp.ne.s32.totalorder %s186, %s187
      %p198 = scmp.eq.s32.totalorder %s28, 0
      %p199 = por %p197, %p198
      %p200 = scmp.ne.s32.totalorder %s186, %s187
      %p201 = scmp.eq.s32.totalorder %s29, 3
      %p202 = por %p200, %p201
      %p204 = scmp.ne.s32.totalorder %s187, %s203
      %p205 = scmp.eq.s32.totalorder %s29, 0
      %p206 = por %p204, %p205
      %p207 = scmp.le.s32.totalorder 1, %s23
      %p208 = scmp.lt.s32.totalorder %s23, 5
      %p209 = pnand %p207, %p208
      %p210 = pneg %p209
      // Predicated region
      $region9: #{tpu_custom_call.1} parent=5 // pred_check
        _
      $region10: #{tpu_custom_call.1} parent=5 // pred_check_branch
        %212 = sbr.rel (%p209) target = $region12
      $region11: #{tpu_custom_call.1} parent=5 // pred_region
        %s213 = ssub.s32 %s23, 1
        // Predicated region
        $region13: #{tpu_custom_call.1} parent=11 // pred_check
          %p214 = pneg %p84
        $region14: #{tpu_custom_call.1} parent=11 // pred_check_branch
          %216 = sbr.rel (%p214) target = $region16
        $region15: #{tpu_custom_call.1} parent=11 // pred_region
          %s218 = ssub.s32 512, 512
          %219 = vsyncadd [#allocation7], %s218
          %s220 = sshll.u32 [#allocation6], 4
          %s221 = int_to_ptr.vmem [resolvable:$true] %s220
          %226 = dma.hbm_to_vmem [thread:$0]  %s1, 512, %s221, [#allocation7], 64, 64, 4
        $region16: #{tpu_custom_call.1} parent=11 // pred_fallthru
          _
        // Predicated region
        $region17: #{tpu_custom_call.1} parent=11 // pred_check
          %p227 = pneg %p105
        $region18: #{tpu_custom_call.1} parent=11 // pred_check_branch
          %229 = sbr.rel (%p227) target = $region20
        $region19: #{tpu_custom_call.1} parent=11 // pred_region
          _
        $region20: #{tpu_custom_call.1} parent=11 // pred_fallthru
          _
        // Predicated region
        $region21: #{tpu_custom_call.1} parent=11 // pred_check
          %p230 = pneg %p126
        $region22: #{tpu_custom_call.1} parent=11 // pred_check_branch
          %232 = sbr.rel (%p230) target = $region24
        $region23: #{tpu_custom_call.1} parent=11 // pred_region
          %s234 = ssub.s32 2048, 2048
          %235 = vsyncadd [#allocation7], %s234
          %s236 = sshll.u32 [#allocation8], 4
          %s237 = int_to_ptr.vmem [resolvable:$true] %s236
          %242 = dma.hbm_to_vmem [thread:$0]  %s3, 2048, %s237, [#allocation7], 128, 128, 8
        $region24: #{tpu_custom_call.1} parent=11 // pred_fallthru
          _
        // Predicated region
        $region25: #{tpu_custom_call.1} parent=11 // pred_check
          %p243 = pneg %p147
        $region26: #{tpu_custom_call.1} parent=11 // pred_check_branch
          %245 = sbr.rel (%p243) target = $region28
        $region27: #{tpu_custom_call.1} parent=11 // pred_region
          _
        $region28: #{tpu_custom_call.1} parent=11 // pred_fallthru
          _
      $region12: #{tpu_custom_call.1} parent=5 // pred_fallthru
        _
      %p246 = scmp.lt.s32.totalorder %s23, 4
      // Predicated region
      $region29: #{tpu_custom_call.1} parent=5 // pred_check
        %p247 = pneg %p246
      $region30: #{tpu_custom_call.1} parent=5 // pred_check_branch
        %249 = sbr.rel (%p247) target = $region32
      $region31: #{tpu_custom_call.1} parent=5 // pred_region
        // Predicated region
        $region33: #{tpu_custom_call.1} parent=31 // pred_check
          %p250 = pneg %p57
        $region34: #{tpu_custom_call.1} parent=31 // pred_check_branch
          %252 = sbr.rel (%p250) target = $region36
        $region35: #{tpu_custom_call.1} parent=31 // pred_region
          %s253 = sand.u32 %s47, 1
          %s254 = scalar_lea.sflag [#allocation4], %s253
          %s255 = sand.u32 %s47, 1
          %s256 = smul.addr %s255, 4
          %s257 = scalar_lea.vmem [#allocation3], %s256
          %s259 = ssub.s32 64, 64
          %260 = vsyncadd %s254, %s259
          %s261 = smul.addr %s30, 2
          %s262 = sadd.s32 %s31, %s261
          %s263 = smul.addr %s262, 64
          %s264 = scalar_lea.hbm %s0, %s263
          %s266 = sshll.u32 %s257, 4
          %s267 = int_to_ptr.vmem [resolvable:$true] %s266
          %269 = dma.hbm_to_vmem [thread:$0]  %s264, 64, %s267, %s254
        $region36: #{tpu_custom_call.1} parent=31 // pred_fallthru
          _
      $region32: #{tpu_custom_call.1} parent=5 // pred_fallthru
        _
      %p270 = scmp.le.s32.totalorder 1, %s23
      %p271 = scmp.lt.s32.totalorder %s23, 5
      %p272 = pnand %p270, %p271
      %p273 = pneg %p272
      // Predicated region
      $region37: #{tpu_custom_call.1} parent=5 // pred_check
        _
      $region38: #{tpu_custom_call.1} parent=5 // pred_check_branch
        %275 = sbr.rel (%p272) target = $region40
      $region39: #{tpu_custom_call.1} parent=5 // pred_region
        %s276 = ssub.s32 %s23, 1
        %s277 = sand.u32 %s50, 1
        %s278 = scalar_lea.sflag [#allocation4], %s277
        %s279 = sand.u32 %s50, 1
        %s280 = smul.addr %s279, 4
        %s281 = scalar_lea.vmem [#allocation3], %s280
        // Predicated region
        $region41: #{tpu_custom_call.1} parent=39 // pred_check
          %p282 = pneg %p63
        $region42: #{tpu_custom_call.1} parent=39 // pred_check_branch
          %284 = sbr.rel (%p282) target = $region44
        $region43: #{tpu_custom_call.1} parent=39 // pred_region
          %285 = dma.done %s278, 64
        $region44: #{tpu_custom_call.1} parent=39 // pred_fallthru
          _
        // Predicated region
        $region45: #{tpu_custom_call.1} parent=39 // pred_check
          %p286 = pneg %p84
        $region46: #{tpu_custom_call.1} parent=39 // pred_check_branch
          %288 = sbr.rel (%p286) target = $region48
        $region47: #{tpu_custom_call.1} parent=39 // pred_region
          %289 = dma.done [#allocation7], 512
        $region48: #{tpu_custom_call.1} parent=39 // pred_fallthru
          _
        // Predicated region
        $region49: #{tpu_custom_call.1} parent=39 // pred_check
          %p290 = pneg %p126
        $region50: #{tpu_custom_call.1} parent=39 // pred_check_branch
          %292 = sbr.rel (%p290) target = $region52
        $region51: #{tpu_custom_call.1} parent=39 // pred_region
          %293 = dma.done [#allocation7], 2048
        $region52: #{tpu_custom_call.1} parent=39 // pred_fallthru
          _
        %s294 = sand.u32 %s50, 1
        %s295 = scalar_lea.sflag [#allocation4], %s294
        %s296 = sand.u32 %s50, 1
        %s297 = smul.addr %s296, 4
        %s298 = scalar_lea.vmem [#allocation3], %s297
        %p299 = pneg %p63
        %p300 = pneg %p60
        %p301 = pneg %p84
        %p302 = pneg %p81
        %p303 = pneg %p105
        %p304 = pneg %p102
        %p305 = pneg %p126
        %p306 = pneg %p123
        %p307 = pneg %p147
        %p308 = pneg %p144
        %p309 = pneg %p173
        %p310 = pneg %p170
        %s311 = sand.u32 %s160, 1
        %s312 = scalar_lea.sflag [#allocation5], %s311
        %s313 = sand.u32 %s160, 1
        %s314 = scalar_lea.vmem [#allocation9], %s313
        %p315 = pneg %p199
        %p316 = pneg %p196
        %s317 = sand.u32 %s186, 1
        %s318 = scalar_lea.sflag [#allocation11], %s317
        %s319 = sand.u32 %s186, 1
        %s320 = scalar_lea.vmem [#allocation10], %s319
        %p322 = scmp.eq.s32.totalorder %s33, 0
        // Predicated region
        $region53: #{tpu_custom_call.1} parent=39 // pred_check
          %p323 = pneg %p322
        $region54: #{tpu_custom_call.1} parent=39 // pred_check_branch
          %325 = sbr.rel (%p323) target = $region56
        $region55: #{tpu_custom_call.1} parent=39 // pred_region
          %326 = vst [vmem:[#allocation2] sm:$0x1] 0.0
        $region56: #{tpu_custom_call.1} parent=39 // pred_fallthru
          _
        %v327 = vld [vmem:[%s281] sm:$0xf]
        %v328 = vld [vmem:[#allocation6] sm:$0xf]
        %v329 = vld [vmem:[#allocation6 + $0x4] sm:$0xf]
        %v330 = vld [vmem:[#allocation6 + $0x8] sm:$0xf]
        %v331 = vld [vmem:[#allocation6 + $0xc] sm:$0xf]
        %v332 = vld [vmem:[#allocation6 + $0x10] sm:$0xf]
        %v333 = vld [vmem:[#allocation6 + $0x14] sm:$0xf]
        %v334 = vld [vmem:[#allocation6 + $0x18] sm:$0xf]
        %v335 = vld [vmem:[#allocation6 + $0x1c] sm:$0xf]
        %v344 = vunpack.c.l.b16 %v328
        %v345 = vunpack.c.l.b16 %v329
        %v346 = vunpack.c.l.b16 %v330
        %v347 = vunpack.c.l.b16 %v331
        %v348 = vunpack.c.l.b16 %v332
        %v349 = vunpack.c.l.b16 %v333
        %v350 = vunpack.c.l.b16 %v334
        %v351 = vunpack.c.l.b16 %v335
        %v352 = vpack.c.b16 %v345, %v344
        %v353 = vpack.c.b16 %v347, %v346
        %v354 = vpack.c.b16 %v349, %v348
        %v355 = vpack.c.b16 %v351, %v350
        %vm360 = vcmask 523264
        %v362 = vsel %vm360, %v327, 0
        %364 = vmatprep.subr.bf16.mxu0 0
        %365 = vmatpush1.bf16.msra.mxu0 0
        %366 = vmatprep.subr.bf16.mxu0 0
        %367 = vmatpush1.bf16.msra.mxu0 0
        %368 = vmatprep.subr.bf16.mxu0 0
        %369 = vmatpush1.bf16.msra.mxu0 0
        %370 = vmatprep.subr.bf16.mxu0 0
        %371 = vmatpush1.bf16.msra.mxu0 0
        %372 = vmatprep.subr.bf16.mxu0 0
        %373 = vmatpush1.bf16.msra.mxu0 %v355
        %374 = vmatprep.subr.bf16.mxu0 0
        %375 = vmatpush1.bf16.msra.mxu0 %v354
        %376 = vmatprep.subr.bf16.mxu0 0
        %377 = vmatpush1.bf16.msra.mxu0 %v353
        %378 = vmatprep.subr.bf16.mxu0 0
        %379 = vmatpush1.bf16.msra.mxu0 %v352
        %380 = vmatprep.subr.bf16.mxu0 0
        %381 = vmatpush2.bf16.msra.mxu0 0
        %382 = vmatprep.subr.bf16.mxu0 0
        %383 = vmatpush2.bf16.msra.mxu0 0
        %384 = vmatprep.subr.bf16.mxu0 0
        %385 = vmatpush2.bf16.msra.mxu0 0
        %386 = vmatprep.subr.bf16.mxu0 0
        %387 = vmatpush2.bf16.msra.mxu0 0
        %388 = vmatprep.subr.bf16.mxu0 0
        %389 = vmatpush2.bf16.msra.mxu0 0
        %390 = vmatprep.subr.bf16.mxu0 0
        %391 = vmatpush2.bf16.msra.mxu0 0
        %392 = vmatprep.subr.bf16.mxu0 0
        %393 = vmatpush2.bf16.msra.mxu0 0
        %394 = vmatprep.subr.bf16.mxu0 0
        %395 = vmatpush2.bf16.msra.mxu0 0
        %396 = vmatprep.mubr.bf16.mxu0 0
        %397 = vmatmul.mubr.bf16.gmra.mxu0 %v362
        %v398 = vpop.f32.mrf.mxu0
        %v399 = vadd.f32 0.0, %v398
        %v400 = vpop.f32.mrf.mxu0
        %v401 = vpop.f32.mrf.mxu0
        %v402 = vpop.f32.mrf.mxu0
        %403 = vdwg.mxu0
        %v404 = vld [vmem:[#allocation2] sm:$0x1]
        %v405 = vrot.slane %v399, 4
        %v406 = vadd.f32 %v399, %v405
        %v407 = vrot.slane %v406, 2
        %v408 = vadd.f32 %v406, %v407
        %v409 = vrot.slane %v408, 1
        %v410 = vadd.f32 %v408, %v409
        %v411 = vadd.f32 %v404, %v410
        %412 = vst [vmem:[#allocation2] sm:$0x1] %v411
        %p413 = scmp.eq.s32.totalorder %s33, 1
        // Predicated region
        $region57: #{tpu_custom_call.1} parent=39 // pred_check
          %p414 = pneg %p413
        $region58: #{tpu_custom_call.1} parent=39 // pred_check_branch
          %416 = sbr.rel (%p414) target = $region60
        $region59: #{tpu_custom_call.1} parent=39 // pred_region
          %v417 = vld [vmem:[#allocation2] sm:$0x1]
          %v418 = vmul.f32 %v417, 0.0625
          %v419 = vld [vmem:[%s2] sm:$0x1]
          %v420 = vadd.f32 %v418, %v419
          %421 = vst [vmem:[%s320] sm:$0x1] %v420
          %v422 = vld [vmem:[#allocation8] sm:$0xff]
          %v423 = vld [vmem:[#allocation8 + $0x8] sm:$0xff]
          %v424 = vld [vmem:[#allocation8 + $0x10] sm:$0xff]
          %v425 = vld [vmem:[#allocation8 + $0x18] sm:$0xff]
          %v426 = vld [vmem:[#allocation8 + $0x20] sm:$0xff]
          %v427 = vld [vmem:[#allocation8 + $0x28] sm:$0xff]
          %v428 = vld [vmem:[#allocation8 + $0x30] sm:$0xff]
          %v429 = vld [vmem:[#allocation8 + $0x38] sm:$0xff]
          %v430 = vld [vmem:[#allocation8 + $0x40] sm:$0xff]
          %v431 = vld [vmem:[#allocation8 + $0x48] sm:$0xff]
          %v432 = vld [vmem:[#allocation8 + $0x50] sm:$0xff]
          %v433 = vld [vmem:[#allocation8 + $0x58] sm:$0xff]
          %v434 = vld [vmem:[#allocation8 + $0x60] sm:$0xff]
          %v435 = vld [vmem:[#allocation8 + $0x68] sm:$0xff]
          %v436 = vld [vmem:[#allocation8 + $0x70] sm:$0xff]
          %v437 = vld [vmem:[#allocation8 + $0x78] sm:$0xff]
          %v438 = vld [vmem:[%s4] sm:$0x1]
          %439 = vmatprep.subr.mxu0 0.0
          %440 = vmatpush1.msra.mxu0 %v437
          %441 = vmatprep.subr.mxu0 0.0
          %442 = vmatpush1.msra.mxu0 %v436
          %443 = vmatprep.subr.mxu0 0.0
          %444 = vmatpush1.msra.mxu0 %v435
          %445 = vmatprep.subr.mxu0 0.0
          %446 = vmatpush1.msra.mxu0 %v434
          %447 = vmatprep.subr.mxu0 0.0
          %448 = vmatpush1.msra.mxu0 %v433
          %449 = vmatprep.subr.mxu0 0.0
          %450 = vmatpush1.msra.mxu0 %v432
          %451 = vmatprep.subr.mxu0 0.0
          %452 = vmatpush1.msra.mxu0 %v431
          %453 = vmatprep.subr.mxu0 0.0
          %454 = vmatpush1.msra.mxu0 %v430
          %455 = vmatprep.subr.mxu0 0.0
          %456 = vmatpush1.msra.mxu0 %v429
          %457 = vmatprep.subr.mxu0 0.0
          %458 = vmatpush1.msra.mxu0 %v428
          %459 = vmatprep.subr.mxu0 0.0
          %460 = vmatpush1.msra.mxu0 %v427
          %461 = vmatprep.subr.mxu0 0.0
          %462 = vmatpush1.msra.mxu0 %v426
          %463 = vmatprep.subr.mxu0 0.0
          %464 = vmatpush1.msra.mxu0 %v425
          %465 = vmatprep.subr.mxu0 0.0
          %466 = vmatpush1.msra.mxu0 %v424
          %467 = vmatprep.subr.mxu0 0.0
          %468 = vmatpush1.msra.mxu0 %v423
          %469 = vmatprep.subr.mxu0 0.0
          %470 = vmatpush1.msra.mxu0 %v422
          %471 = vmatprep.subr.mxu0 0.0
          %472 = vmatpush2.msra.mxu0 0.0
          %473 = vmatprep.subr.mxu0 0.0
          %474 = vmatpush2.msra.mxu0 0.0
          %475 = vmatprep.subr.mxu0 0.0
          %476 = vmatpush2.msra.mxu0 0.0
          %477 = vmatprep.subr.mxu0 0.0
          %478 = vmatpush2.msra.mxu0 0.0
          %479 = vmatprep.subr.mxu0 0.0
          %480 = vmatpush2.msra.mxu0 0.0
          %481 = vmatprep.subr.mxu0 0.0
          %482 = vmatpush2.msra.mxu0 0.0
          %483 = vmatprep.subr.mxu0 0.0
          %484 = vmatpush2.msra.mxu0 0.0
          %485 = vmatprep.subr.mxu0 0.0
          %486 = vmatpush2.msra.mxu0 0.0
          %487 = vmatprep.subr.mxu0 0.0
          %488 = vmatpush2.msra.mxu0 0.0
          %489 = vmatprep.subr.mxu0 0.0
          %490 = vmatpush2.msra.mxu0 0.0
          %491 = vmatprep.subr.mxu0 0.0
          %492 = vmatpush2.msra.mxu0 0.0
          %493 = vmatprep.subr.mxu0 0.0
          %494 = vmatpush2.msra.mxu0 0.0
          %495 = vmatprep.subr.mxu0 0.0
          %496 = vmatpush2.msra.mxu0 0.0
          %497 = vmatprep.subr.mxu0 0.0
          %498 = vmatpush2.msra.mxu0 0.0
          %499 = vmatprep.subr.mxu0 0.0
          %500 = vmatpush2.msra.mxu0 0.0
          %501 = vmatprep.subr.mxu0 0.0
          %502 = vmatpush2.msra.mxu0 0.0
          %503 = vmatprep.mubr.f32.mxu0 0.0
          %504 = vmatmul.mubr.f32.gmra.mxu0 %v420
          %v505 = vpop.f32.mrf.mxu0
          %v506 = vadd.f32 %v438, %v505
          %v507 = vpop.f32.mrf.mxu0
          %508 = vdwg.mxu0
          %509 = vst [vmem:[%s314] sm:$0x1] %v506
        $region60: #{tpu_custom_call.1} parent=39 // pred_fallthru
          _
        %s510 = sand.u32 %s160, 1
        %s511 = scalar_lea.sflag [#allocation5], %s510
        %s512 = sand.u32 %s160, 1
        %s513 = scalar_lea.vmem [#allocation9], %s512
        %s514 = sand.u32 %s186, 1
        %s515 = scalar_lea.sflag [#allocation11], %s514
        %s516 = sand.u32 %s186, 1
        %s517 = scalar_lea.vmem [#allocation10], %s516
        // Predicated region
        $region61: #{tpu_custom_call.1} parent=39 // pred_check
          %p518 = pneg %p170
        $region62: #{tpu_custom_call.1} parent=39 // pred_check_branch
          %520 = sbr.rel (%p518) target = $region64
        $region63: #{tpu_custom_call.1} parent=39 // pred_region
          %s522 = ssub.s32 16, 16
          %523 = vsyncadd %s511, %s522
          %s524 = smul.addr %s32, 16
          %s525 = scalar_lea.hbm %s5, %s524
          %s527 = sshll.u32 %s513, 4
          %s528 = int_to_ptr.vmem [resolvable:$true] %s527
          %530 = dma.vmem_to_hbm [thread:$0]  %s528, 16, %s525, %s511
        $region64: #{tpu_custom_call.1} parent=39 // pred_fallthru
          _
        // Predicated region
        $region65: #{tpu_custom_call.1} parent=39 // pred_check
          %p531 = pneg %p196
        $region66: #{tpu_custom_call.1} parent=39 // pred_check_branch
          %533 = sbr.rel (%p531) target = $region68
        $region67: #{tpu_custom_call.1} parent=39 // pred_region
          %s535 = ssub.s32 16, 16
          %536 = vsyncadd %s515, %s535
          %s537 = smul.addr %s32, 16
          %s538 = scalar_lea.hbm %s6, %s537
          %s540 = sshll.u32 %s517, 4
          %s541 = int_to_ptr.vmem [resolvable:$true] %s540
          %543 = dma.vmem_to_hbm [thread:$0]  %s541, 16, %s538, %s515
        $region68: #{tpu_custom_call.1} parent=39 // pred_fallthru
          _
      $region40: #{tpu_custom_call.1} parent=5 // pred_fallthru
        _
      %p544 = scmp.le.s32.totalorder 2, %s23
      // Predicated region
      $region69: #{tpu_custom_call.1} parent=5 // pred_check
        %p545 = pneg %p544
      $region70: #{tpu_custom_call.1} parent=5 // pred_check_branch
        %547 = sbr.rel (%p545) target = $region72
      $region71: #{tpu_custom_call.1} parent=5 // pred_region
        %s548 = ssub.s32 %s23, 2
        // Predicated region
        $region73: #{tpu_custom_call.1} parent=71 // pred_check
          %p549 = pneg %p176
        $region74: #{tpu_custom_call.1} parent=71 // pred_check_branch
          %551 = sbr.rel (%p549) target = $region76
        $region75: #{tpu_custom_call.1} parent=71 // pred_region
          %s552 = sand.u32 %s161, 1
          %s553 = scalar_lea.sflag [#allocation5], %s552
          %s554 = sand.u32 %s161, 1
          %s555 = scalar_lea.vmem [#allocation9], %s554
          %556 = dma.done %s553, 16
        $region76: #{tpu_custom_call.1} parent=71 // pred_fallthru
          _
        // Predicated region
        $region77: #{tpu_custom_call.1} parent=71 // pred_check
          %p557 = pneg %p202
        $region78: #{tpu_custom_call.1} parent=71 // pred_check_branch
          %559 = sbr.rel (%p557) target = $region80
        $region79: #{tpu_custom_call.1} parent=71 // pred_region
          %s560 = sand.u32 %s187, 1
          %s561 = scalar_lea.sflag [#allocation11], %s560
          %s562 = sand.u32 %s187, 1
          %s563 = scalar_lea.vmem [#allocation10], %s562
          %564 = dma.done %s561, 16
        $region80: #{tpu_custom_call.1} parent=71 // pred_fallthru
          _
      $region72: #{tpu_custom_call.1} parent=5 // pred_fallthru
        _
    $region6: #{tpu_custom_call.1} parent=1 // loop_footer
      %s27 = sadd.s32 1, %s23
    $region7: #{tpu_custom_call.1} parent=1 // loop_footer_branch
      %22 = sbr.rel target = $region3
    $region8: #{tpu_custom_call.1} parent=1 // loop_exit
      _
    %565 = vsyncpa [#allocation4], 1
    %s566 = scalar_lea.sflag [#allocation4], 1
    %567 = vsyncpa %s566, 1
    %568 = vsyncpa [#allocation7], 1
    %569 = vsyncpa [#allocation5], 1
    %s570 = scalar_lea.sflag [#allocation5], 1
    %571 = vsyncpa %s570, 1
    %572 = vsyncpa [#allocation11], 1
    %s573 = scalar_lea.sflag [#allocation11], 1
    %574 = vsyncpa %s573, 1

</llo_original>
